<compile_context>
chip_gen: v7x
topology: tpu7x:2x2x1
jax: 0.10.0
libtpu: 0.0.40
codegen_flags: <defaults>
</compile_context>

<pallas_src>
import jax
import jax.numpy as jnp
from jax import lax
from jax.experimental import pallas as pl
from jax.experimental.pallas import tpu as pltpu


def _kernel_compute_fun_kernel(feat_ref, w1t_ref, b1_ref, w2t_ref, b2_ref,
                               eye_ref, selt_ref, basis_ref, out_ref):
    """One edge tile, computed with edges in the lane dimension.

    feat_ref  : [tE, F]   streaming dtype (HBM layout; transpose fused into MXU)
    w1t_ref   : [H, F]    streaming dtype (w1 transposed)
    b1_ref    : [H, 1]    f32
    w2t_ref   : [DB, H]   streaming dtype (w2 transposed)
    b2_ref    : [DB, 1]   f32
    eye_ref   : [DB, DB]  streaming dtype identity (MXU transpose of basis tile)
    selt_ref  : [D, DB]   f32 block 0/1 matrix that sums over the basis axis
    basis_ref : [tE, DB]  streaming dtype
    out_ref   : [D, tE]   lane-dense output tile
    """
    nt = (((1,), (1,)), ((), ()))   # contract lhs dim 1 with rhs dim 1 (A @ B^T)

    # h = w1^T @ feat^T : [H, tE].  feat transpose fused into the contraction
    # (same pattern as q @ k^T in attention -> native MXU lowering).
    h = lax.dot_general(w1t_ref[...], feat_ref[...], nt,
                        preferred_element_type=jnp.float32)
    h = jnp.maximum(h + b1_ref[...], 0.0)          # bias broadcast along lanes
    h = h.astype(w2t_ref.dtype)

    # r = w2^T @ h : [DB, tE]  (f32 accumulation on the MXU)
    r = jnp.dot(w2t_ref[...], h, preferred_element_type=jnp.float32)
    r = r + b2_ref[...]

    # Basis tile transposed to [DB, tE] on the MXU (identity @ basis^T): exact,
    # keeps the elementwise product + reduction lane-dense in the edge dim.
    basis_t = lax.dot_general(eye_ref[...], basis_ref[...], nt,
                              preferred_element_type=jnp.float32)

    p = r * basis_t                                  # [DB, tE], f32

    # kernel[d, e] = sum_b R[e, d, b] * basis[e, d, b] = (selt @ p)[d, e]
    out = jnp.dot(selt_ref[...], p, preferred_element_type=jnp.float32)  # [D, tE]
    out_ref[...] = out.astype(out_ref.dtype)


def _round_up(x, m):
    return ((x + m - 1) // m) * m


def _pick_tile_e(E, requested, min_tiles=4):
    """Edge tile: multiple of 128 (lane-dense output store), capped so the grid
    keeps >= min_tiles steps (both v7x TensorCores busy + pipeline overlap)."""
    t = _round_up(max(1, min(int(requested), E)), 128)
    if E >= min_tiles * 128:
        cap = max(128, (E // min_tiles) // 128 * 128)
        t = min(t, cap)
    return t


def kernel_compute_fun(feat, basis, params, *, reverse=False, graph=None,
                       tile_e=2048, interpret=False):
    """Pallas implementation of KernelComputeFun.forward.

    feat  : [E, F]     edge (radial) features (f32 or bf16; bf16 halves HBM traffic)
    basis : [E, D, B]  equivariant basis (same dtype policy as feat)
    params: dict with w1 [F, H], b1 [H], w2 [H, D*B], b2 [D*B]
    Returns kernel [E, D] = sum_b rp(feat)[e, d, b] * basis[e, d, b].
    """
    # TODO(synk): `reverse` / `graph` flip edge direction inside the radial-profile
    # submodule; with a graph-free 2-layer MLP rp they are no-ops here.
    del reverse, graph

    E, F = feat.shape
    Eb, D, B = basis.shape
    assert Eb == E
    DB = D * B
    H = params["w1"].shape[1]
    assert params["w1"].shape == (F, H)
    assert params["w2"].shape == (H, DB)

    stream_dtype = feat.dtype
    out_dtype = feat.dtype

    # Tiny parameter tensors: pre-transpose so every matmul keeps edges in lanes.
    w1t = jnp.asarray(params["w1"]).T.astype(stream_dtype)             # [H, F]
    w2t = jnp.asarray(params["w2"]).T.astype(stream_dtype)             # [DB, H]
    b1 = jnp.asarray(params["b1"]).reshape(H, 1).astype(jnp.float32)   # [H, 1]
    b2 = jnp.asarray(params["b2"]).reshape(DB, 1).astype(jnp.float32)  # [DB, 1]
    eye = jnp.eye(DB, dtype=stream_dtype)                              # [DB, DB]
    # selt[d, d*B + b] = 1 : sums over the basis axis as a tiny matmul.
    selt = (jnp.arange(D)[:, None] == (jnp.arange(DB)[None, :] // B)
            ).astype(jnp.float32)                                      # [D, DB]

    # Flatten trailing dims only (contiguous -> no HBM pass, no transpose).
    basis2 = basis.reshape(E, DB)

    tile = _pick_tile_e(E, tile_e)
    n_tiles = pl.cdiv(E, tile)     # ragged last tile: writeback is masked by Pallas

    # VMEM budget from actual tile bytes (double-buffered I/O + f32 temporaries),
    # clamped below v7x's 64 MiB per-TC physical VMEM.
    itemsize = jnp.dtype(stream_dtype).itemsize
    in_tile_bytes = tile * (F + DB) * itemsize
    out_tile_bytes = tile * D * jnp.dtype(out_dtype).itemsize
    tmp_bytes = 6 * tile * max(F, H, DB) * 4
    vmem_limit = int(min(max(2 * (in_tile_bytes + out_tile_bytes) + tmp_bytes
                             + (2 << 20), 16 << 20), 56 << 20))

    out_t = pl.pallas_call(
        _kernel_compute_fun_kernel,
        out_shape=jax.ShapeDtypeStruct((D, E), out_dtype),
        grid_spec=pltpu.PrefetchScalarGridSpec(
            num_scalar_prefetch=0,
            grid=(n_tiles,),
            in_specs=[
                pl.BlockSpec((tile, F), lambda i: (i, 0)),    # feat tile
                pl.BlockSpec((H, F), lambda i: (0, 0)),       # w1^T
                pl.BlockSpec((H, 1), lambda i: (0, 0)),       # b1
                pl.BlockSpec((DB, H), lambda i: (0, 0)),      # w2^T
                pl.BlockSpec((DB, 1), lambda i: (0, 0)),      # b2
                pl.BlockSpec((DB, DB), lambda i: (0, 0)),     # identity (basis transpose)
                pl.BlockSpec((D, DB), lambda i: (0, 0)),      # basis-axis sum matrix
                pl.BlockSpec((tile, DB), lambda i: (i, 0)),   # basis tile
            ],
            out_specs=pl.BlockSpec((D, tile), lambda i: (0, i)),
        ),
        compiler_params=pltpu.CompilerParams(
            dimension_semantics=("parallel",),   # shard edge grid across TCs (v7x)
            vmem_limit_bytes=vmem_limit,
        ),
        interpret=interpret,
    )(feat, w1t, b1, w2t, b2, eye, selt, basis2)

    # Transposed result is only D*E elements; flipping it back outside the kernel
    # is negligible next to the feat/basis streaming traffic.
    return out_t.T


def _reference(feat, basis, params):
    hp = jax.lax.Precision.HIGHEST
    h = jnp.maximum(jnp.dot(feat, params["w1"], precision=hp) + params["b1"], 0.0)
    r = jnp.dot(h, params["w2"], precision=hp) + params["b2"]
    E, D, B = basis.shape
    return jnp.sum(r.reshape(E, D, B) * basis, axis=-1)


if __name__ == "__main__":
    # E edges (not a multiple of 128 -> exercises the masked ragged last tile),
    # F edge-feature dim, H hidden dim of the radial MLP, D channels, B basis fns.
    E, F, H, D, B = 1000, 32, 32, 4, 8

    key = jax.random.PRNGKey(0)
    k_feat, k_basis, k_w1, k_b1, k_w2, k_b2 = jax.random.split(key, 6)

    feat = jax.random.normal(k_feat, (E, F), dtype=jnp.float32)
    basis = jax.random.normal(k_basis, (E, D, B), dtype=jnp.float32)

    params = {
        "w1": 0.1 * jax.random.normal(k_w1, (F, H), dtype=jnp.float32),
        "b1": 0.1 * jax.random.normal(k_b1, (H,), dtype=jnp.float32),
        "w2": 0.1 * jax.random.normal(k_w2, (H, D * B), dtype=jnp.float32),
        "b2": 0.1 * jax.random.normal(k_b2, (D * B,), dtype=jnp.float32),
    }

    out = kernel_compute_fun(feat, basis, params, reverse=False)
    out = jax.block_until_ready(out)

    ref = _reference(feat, basis, params)
    assert out.shape == (E, D)
    max_err = float(jnp.max(jnp.abs(out - ref)))
    # MXU f32 path may use bf16 multi-pass accumulation; tolerance sized for that
    # while still catching any layout/indexing bug (which would be O(1)).
    assert jnp.allclose(out, ref, atol=1e-2, rtol=1e-2), max_err

    print("KERNEL_OK")
</pallas_src>

<mosaic_0001>
module attributes {stable_mosaic.version = 11 : i64} {
  func.func @_kernel_compute_fun_kernel(%arg0: i32, %arg1: memref<128x32xf32, #tpu.memory_space<vmem>>, %arg2: memref<32x32xf32, #tpu.memory_space<vmem>>, %arg3: memref<32x1xf32, #tpu.memory_space<vmem>>, %arg4: memref<32x32xf32, #tpu.memory_space<vmem>>, %arg5: memref<32x1xf32, #tpu.memory_space<vmem>>, %arg6: memref<32x32xf32, #tpu.memory_space<vmem>>, %arg7: memref<4x32xf32, #tpu.memory_space<vmem>>, %arg8: memref<128x32xf32, #tpu.memory_space<vmem>>, %arg9: memref<4x128xf32, #tpu.memory_space<vmem>>) attributes {dimension_semantics = [#tpu.dimension_semantics<parallel>], iteration_bounds = array<i64: 8>, scalar_prefetch = 0 : i64, scratch_operands = 0 : i64, tpu.core_type = #tpu.core_type<tc>, window_params = [{transform_indices = @transform_0, window_bounds = array<i64: 128, 32>}, {pipeline_mode = #tpu.pipeline_mode<synchronous>, transform_indices = @transform_1, window_bounds = array<i64: 32, 32>}, {pipeline_mode = #tpu.pipeline_mode<synchronous>, transform_indices = @transform_2, window_bounds = array<i64: 32, 1>}, {pipeline_mode = #tpu.pipeline_mode<synchronous>, transform_indices = @transform_3, window_bounds = array<i64: 32, 32>}, {pipeline_mode = #tpu.pipeline_mode<synchronous>, transform_indices = @transform_4, window_bounds = array<i64: 32, 1>}, {pipeline_mode = #tpu.pipeline_mode<synchronous>, transform_indices = @transform_5, window_bounds = array<i64: 32, 32>}, {pipeline_mode = #tpu.pipeline_mode<synchronous>, transform_indices = @transform_6, window_bounds = array<i64: 4, 32>}, {transform_indices = @transform_7, window_bounds = array<i64: 128, 32>}, {transform_indices = @transform_8, window_bounds = array<i64: 4, 128>}]} {
    %c0 = arith.constant 0 : index
    %c0_0 = arith.constant 0 : index
    %0 = vector.load %arg2[%c0, %c0_0] : memref<32x32xf32, #tpu.memory_space<vmem>>, vector<32x32xf32>
    %c0_1 = arith.constant 0 : index
    %c0_2 = arith.constant 0 : index
    %1 = vector.load %arg1[%c0_1, %c0_2] : memref<128x32xf32, #tpu.memory_space<vmem>>, vector<128x32xf32>
    %cst = arith.constant dense<0.000000e+00> : vector<32x128xf32>
    %2 = tpu.matmul %0, %1, %cst {dimension_numbers = #tpu.dot_dimension_numbers<[1], [1], [0], [0], [0, 0, 1, 0], [], []>} : vector<32x32xf32>, vector<128x32xf32>, vector<32x128xf32> -> vector<32x128xf32>
    %c0_3 = arith.constant 0 : index
    %c0_4 = arith.constant 0 : index
    %3 = vector.load %arg3[%c0_3, %c0_4] : memref<32x1xf32, #tpu.memory_space<vmem>>, vector<32x1xf32>
    %4 = vector.broadcast %3 : vector<32x1xf32> to vector<32x128xf32>
    %5 = arith.addf %2, %4 : vector<32x128xf32>
    %cst_5 = arith.constant 0.000000e+00 : f32
    %6 = vector.broadcast %cst_5 : f32 to vector<32x128xf32>
    %7 = arith.maximumf %5, %6 : vector<32x128xf32>
    %c0_6 = arith.constant 0 : index
    %c0_7 = arith.constant 0 : index
    %8 = vector.load %arg4[%c0_6, %c0_7] : memref<32x32xf32, #tpu.memory_space<vmem>>, vector<32x32xf32>
    %cst_8 = arith.constant dense<0.000000e+00> : vector<32x128xf32>
    %9 = tpu.matmul %8, %7, %cst_8 {dimension_numbers = #tpu.dot_dimension_numbers<[1], [0], [0], [1], [0, 0, 1, 1], [], []>} : vector<32x32xf32>, vector<32x128xf32>, vector<32x128xf32> -> vector<32x128xf32>
    %c0_9 = arith.constant 0 : index
    %c0_10 = arith.constant 0 : index
    %10 = vector.load %arg5[%c0_9, %c0_10] : memref<32x1xf32, #tpu.memory_space<vmem>>, vector<32x1xf32>
    %11 = vector.broadcast %10 : vector<32x1xf32> to vector<32x128xf32>
    %12 = arith.addf %9, %11 : vector<32x128xf32>
    %c0_11 = arith.constant 0 : index
    %c0_12 = arith.constant 0 : index
    %13 = vector.load %arg6[%c0_11, %c0_12] : memref<32x32xf32, #tpu.memory_space<vmem>>, vector<32x32xf32>
    %c0_13 = arith.constant 0 : index
    %c0_14 = arith.constant 0 : index
    %14 = vector.load %arg8[%c0_13, %c0_14] : memref<128x32xf32, #tpu.memory_space<vmem>>, vector<128x32xf32>
    %cst_15 = arith.constant dense<0.000000e+00> : vector<32x128xf32>
    %15 = tpu.matmul %13, %14, %cst_15 {dimension_numbers = #tpu.dot_dimension_numbers<[1], [1], [0], [0], [0, 0, 1, 0], [], []>} : vector<32x32xf32>, vector<128x32xf32>, vector<32x128xf32> -> vector<32x128xf32>
    %16 = arith.mulf %12, %15 : vector<32x128xf32>
    %c0_16 = arith.constant 0 : index
    %c0_17 = arith.constant 0 : index
    %17 = vector.load %arg7[%c0_16, %c0_17] : memref<4x32xf32, #tpu.memory_space<vmem>>, vector<4x32xf32>
    %cst_18 = arith.constant dense<0.000000e+00> : vector<4x128xf32>
    %18 = tpu.matmul %17, %16, %cst_18 {dimension_numbers = #tpu.dot_dimension_numbers<[1], [0], [0], [1], [0, 0, 1, 1], [], []>} : vector<4x32xf32>, vector<32x128xf32>, vector<4x128xf32> -> vector<4x128xf32>
    %c0_19 = arith.constant 0 : index
    %c0_20 = arith.constant 0 : index
    %19 = vector.load %arg9[%c0_19, %c0_20] : memref<4x128xf32, #tpu.memory_space<vmem>>, vector<4x128xf32>
    tpu.vector_store %arg9[%c0_19, %c0_20], %18 {strides = array<i32>} : memref<4x128xf32, #tpu.memory_space<vmem>>, vector<4x128xf32>,
    return
  }
  func.func @transform_0(%arg0: i32) -> (i32, i32) {
    %c0_i32 = arith.constant 0 : i32
    %c0_i32_0 = arith.constant 0 : i32
    return %arg0, %c0_i32 : i32, i32
  }
  func.func @transform_1(%arg0: i32) -> (i32, i32) {
    %c0_i32 = arith.constant 0 : i32
    %c0_i32_0 = arith.constant 0 : i32
    %c0_i32_1 = arith.constant 0 : i32
    return %c0_i32, %c0_i32_0 : i32, i32
  }
  func.func @transform_2(%arg0: i32) -> (i32, i32) {
    %c0_i32 = arith.constant 0 : i32
    %c0_i32_0 = arith.constant 0 : i32
    %c0_i32_1 = arith.constant 0 : i32
    return %c0_i32, %c0_i32_0 : i32, i32
  }
  func.func @transform_3(%arg0: i32) -> (i32, i32) {
    %c0_i32 = arith.constant 0 : i32
    %c0_i32_0 = arith.constant 0 : i32
    %c0_i32_1 = arith.constant 0 : i32
    return %c0_i32, %c0_i32_0 : i32, i32
  }
  func.func @transform_4(%arg0: i32) -> (i32, i32) {
    %c0_i32 = arith.constant 0 : i32
    %c0_i32_0 = arith.constant 0 : i32
    %c0_i32_1 = arith.constant 0 : i32
    return %c0_i32, %c0_i32_0 : i32, i32
  }
  func.func @transform_5(%arg0: i32) -> (i32, i32) {
    %c0_i32 = arith.constant 0 : i32
    %c0_i32_0 = arith.constant 0 : i32
    %c0_i32_1 = arith.constant 0 : i32
    return %c0_i32, %c0_i32_0 : i32, i32
  }
  func.func @transform_6(%arg0: i32) -> (i32, i32) {
    %c0_i32 = arith.constant 0 : i32
    %c0_i32_0 = arith.constant 0 : i32
    %c0_i32_1 = arith.constant 0 : i32
    return %c0_i32, %c0_i32_0 : i32, i32
  }
  func.func @transform_7(%arg0: i32) -> (i32, i32) {
    %c0_i32 = arith.constant 0 : i32
    %c0_i32_0 = arith.constant 0 : i32
    return %arg0, %c0_i32 : i32, i32
  }
  func.func @transform_8(%arg0: i32) -> (i32, i32) {
    %c0_i32 = arith.constant 0 : i32
    %c0_i32_0 = arith.constant 0 : i32
    return %c0_i32, %arg0 : i32, i32
  }
}

</mosaic_0001>

<llo_original>
// kernel: tpu_custom_call.1
$region0: #{tpu_custom_call.1}
  #allocation0 [shape = 'u32[]', space=smem, size = 0x4, offset = 0x4, fixed_abs, tag = 'smem constant byte address 0x4 - core index']
  #allocation1 [shape = 'u32[144,128]{1,0:T(1,128)}', space=vmem, size = 0x12000, scoped, tag = 'internal scratch']
  %s0 = inlined_call_operand.vmem [shape: f32[1000,32], index: 0, kind: input, shape index: {}]
  %s1 = inlined_call_operand.vmem [shape: f32[32,32], index: 1, kind: input, shape index: {}]
  %s2 = inlined_call_operand.vmem [shape: f32[32,1], index: 2, kind: input, shape index: {}]
  %s3 = inlined_call_operand.vmem [shape: f32[32,32], index: 3, kind: input, shape index: {}]
  %s4 = inlined_call_operand.vmem [shape: f32[32,1], index: 4, kind: input, shape index: {}]
  %s5 = inlined_call_operand.vmem [shape: f32[32,32], index: 5, kind: input, shape index: {}]
  %s6 = inlined_call_operand.vmem [shape: f32[4,32], index: 6, kind: input, shape index: {}]
  %s7 = inlined_call_operand.vmem [shape: f32[1000,32], index: 7, kind: input, shape index: {}]
  %s8 = inlined_call_operand.hbm [shape: f32[4,1000], index: 8, kind: output, shape index: {}]
  %s9 = sld [smem:[#allocation0]]
  $region65: #{tpu_custom_call.1} parent=0
    _
  %s11 = ssub.s32 1, %s9
  %s12 = scalar_select 0, %s11, %s9
  $region1: #{tpu_custom_call.1} parent=0
    #allocation2 [shape = 'u8[4096]{0}', space=vmem, size = 0x1000, scoped, tag = 'output window, operand 0']
    #allocation3 [shape = 's32[2]{0}', space=sflag, size = 0x8, scoped, tag = 'scoped memory for tpu_custom_call.1']
    %13 = vsyncpa [#allocation3], 0
    %s14 = scalar_lea.sflag [#allocation3], 1
    %15 = vsyncpa %s14, 0
    loop: start=0, step=1, limit=10
    $region2: #{tpu_custom_call.1} parent=1 // loop_pre_header
      _
    $region3: #{tpu_custom_call.1} parent=1 // loop_header
      %s17 = sphi 0, %s21
      %p18 = scmp.ge.s32.totalorder %s17, 10
      %s27 = sphi 0, %s29
      %s30 = sphi 0, %s27
      %s31 = sphi 0, %s30
      %s47 = sphi 0, %s31
      %s51 = sphi 0, %s51
      %s53 = sphi 0, %s51
      %s54 = sphi 0, %s53
      %s68 = sphi 0, %s54
      %s72 = sphi 0, %s72
      %s74 = sphi 0, %s72
      %s75 = sphi 0, %s74
      %s89 = sphi 0, %s75
      %s93 = sphi 0, %s93
      %s95 = sphi 0, %s93
      %s96 = sphi 0, %s95
      %s110 = sphi 0, %s96
      %s114 = sphi 0, %s114
      %s116 = sphi 0, %s114
      %s117 = sphi 0, %s116
      %s131 = sphi 0, %s117
      %s135 = sphi 0, %s135
      %s137 = sphi 0, %s135
      %s138 = sphi 0, %s137
      %s152 = sphi 0, %s138
      %s156 = sphi 0, %s156
      %s158 = sphi 0, %s156
      %s159 = sphi 0, %s158
      %s173 = sphi 0, %s159
      %s179 = sphi 0, %s181
      %s182 = sphi 0, %s179
      %s183 = sphi 0, %s182
      %s199 = sphi 0, %s183
      %s205 = sphi 0, %s207
      %s208 = sphi 0, %s205
      %s209 = sphi 0, %s208
      %s225 = sphi 0, %s209
    $region4: #{tpu_custom_call.1} parent=1 // loop_header_branch
      %20 = sbr.rel (%p18) target = $region8
    $region5: #{tpu_custom_call.1} parent=1 // loop_body
      %s22 = ssub.s32 %s17, 1
      %s23 = ssub.s32 %s17, 2
      %s24 = sadd.s32 %s17, 1
      %s25 = ssub.s32 %s17, %s24
      %p26 = scmp.eq.s32.totalorder %s25, 0
      %s28 = sadd.s32 %s27, 1
      %s29 = scalar_select %p26, %s27, %s28
      %p32 = pneg %p26
      %p33 = scmp.eq.s32.totalorder %s17, 7
      %p34 = por %p32, %p33
      %p35 = scmp.ne.s32.totalorder %s27, %s30
      %p36 = scmp.eq.s32.totalorder %s17, 0
      %p37 = por %p35, %p36
      %p38 = scmp.ne.s32.totalorder %s27, %s30
      %p39 = scmp.eq.s32.totalorder %s22, 7
      %p40 = por %p38, %p39
      %p41 = scmp.ne.s32.totalorder %s30, %s31
      %p42 = scmp.eq.s32.totalorder %s22, 0
      %p43 = por %p41, %p42
      %p44 = scmp.ne.s32.totalorder %s30, %s31
      %p45 = scmp.eq.s32.totalorder %s23, 7
      %p46 = por %p44, %p45
      %p48 = scmp.ne.s32.totalorder %s31, %s47
      %p49 = scmp.eq.s32.totalorder %s23, 0
      %p50 = por %p48, %p49
      %s52 = sadd.s32 %s51, 1
      %p55 = scmp.eq.s32.totalorder %s17, 7
      %p56 = scmp.ne.s32.totalorder %s51, %s53
      %p57 = scmp.eq.s32.totalorder %s17, 0
      %p58 = por %p56, %p57
      %p59 = scmp.ne.s32.totalorder %s51, %s53
      %p60 = scmp.eq.s32.totalorder %s22, 7
      %p61 = por %p59, %p60
      %p62 = scmp.ne.s32.totalorder %s53, %s54
      %p63 = scmp.eq.s32.totalorder %s22, 0
      %p64 = por %p62, %p63
      %p65 = scmp.ne.s32.totalorder %s53, %s54
      %p66 = scmp.eq.s32.totalorder %s23, 7
      %p67 = por %p65, %p66
      %p69 = scmp.ne.s32.totalorder %s54, %s68
      %p70 = scmp.eq.s32.totalorder %s23, 0
      %p71 = por %p69, %p70
      %s73 = sadd.s32 %s72, 1
      %p76 = scmp.eq.s32.totalorder %s17, 7
      %p77 = scmp.ne.s32.totalorder %s72, %s74
      %p78 = scmp.eq.s32.totalorder %s17, 0
      %p79 = por %p77, %p78
      %p80 = scmp.ne.s32.totalorder %s72, %s74
      %p81 = scmp.eq.s32.totalorder %s22, 7
      %p82 = por %p80, %p81
      %p83 = scmp.ne.s32.totalorder %s74, %s75
      %p84 = scmp.eq.s32.totalorder %s22, 0
      %p85 = por %p83, %p84
      %p86 = scmp.ne.s32.totalorder %s74, %s75
      %p87 = scmp.eq.s32.totalorder %s23, 7
      %p88 = por %p86, %p87
      %p90 = scmp.ne.s32.totalorder %s75, %s89
      %p91 = scmp.eq.s32.totalorder %s23, 0
      %p92 = por %p90, %p91
      %s94 = sadd.s32 %s93, 1
      %p97 = scmp.eq.s32.totalorder %s17, 7
      %p98 = scmp.ne.s32.totalorder %s93, %s95
      %p99 = scmp.eq.s32.totalorder %s17, 0
      %p100 = por %p98, %p99
      %p101 = scmp.ne.s32.totalorder %s93, %s95
      %p102 = scmp.eq.s32.totalorder %s22, 7
      %p103 = por %p101, %p102
      %p104 = scmp.ne.s32.totalorder %s95, %s96
      %p105 = scmp.eq.s32.totalorder %s22, 0
      %p106 = por %p104, %p105
      %p107 = scmp.ne.s32.totalorder %s95, %s96
      %p108 = scmp.eq.s32.totalorder %s23, 7
      %p109 = por %p107, %p108
      %p111 = scmp.ne.s32.totalorder %s96, %s110
      %p112 = scmp.eq.s32.totalorder %s23, 0
      %p113 = por %p111, %p112
      %s115 = sadd.s32 %s114, 1
      %p118 = scmp.eq.s32.totalorder %s17, 7
      %p119 = scmp.ne.s32.totalorder %s114, %s116
      %p120 = scmp.eq.s32.totalorder %s17, 0
      %p121 = por %p119, %p120
      %p122 = scmp.ne.s32.totalorder %s114, %s116
      %p123 = scmp.eq.s32.totalorder %s22, 7
      %p124 = por %p122, %p123
      %p125 = scmp.ne.s32.totalorder %s116, %s117
      %p126 = scmp.eq.s32.totalorder %s22, 0
      %p127 = por %p125, %p126
      %p128 = scmp.ne.s32.totalorder %s116, %s117
      %p129 = scmp.eq.s32.totalorder %s23, 7
      %p130 = por %p128, %p129
      %p132 = scmp.ne.s32.totalorder %s117, %s131
      %p133 = scmp.eq.s32.totalorder %s23, 0
      %p134 = por %p132, %p133
      %s136 = sadd.s32 %s135, 1
      %p139 = scmp.eq.s32.totalorder %s17, 7
      %p140 = scmp.ne.s32.totalorder %s135, %s137
      %p141 = scmp.eq.s32.totalorder %s17, 0
      %p142 = por %p140, %p141
      %p143 = scmp.ne.s32.totalorder %s135, %s137
      %p144 = scmp.eq.s32.totalorder %s22, 7
      %p145 = por %p143, %p144
      %p146 = scmp.ne.s32.totalorder %s137, %s138
      %p147 = scmp.eq.s32.totalorder %s22, 0
      %p148 = por %p146, %p147
      %p149 = scmp.ne.s32.totalorder %s137, %s138
      %p150 = scmp.eq.s32.totalorder %s23, 7
      %p151 = por %p149, %p150
      %p153 = scmp.ne.s32.totalorder %s138, %s152
      %p154 = scmp.eq.s32.totalorder %s23, 0
      %p155 = por %p153, %p154
      %s157 = sadd.s32 %s156, 1
      %p160 = scmp.eq.s32.totalorder %s17, 7
      %p161 = scmp.ne.s32.totalorder %s156, %s158
      %p162 = scmp.eq.s32.totalorder %s17, 0
      %p163 = por %p161, %p162
      %p164 = scmp.ne.s32.totalorder %s156, %s158
      %p165 = scmp.eq.s32.totalorder %s22, 7
      %p166 = por %p164, %p165
      %p167 = scmp.ne.s32.totalorder %s158, %s159
      %p168 = scmp.eq.s32.totalorder %s22, 0
      %p169 = por %p167, %p168
      %p170 = scmp.ne.s32.totalorder %s158, %s159
      %p171 = scmp.eq.s32.totalorder %s23, 7
      %p172 = por %p170, %p171
      %p174 = scmp.ne.s32.totalorder %s159, %s173
      %p175 = scmp.eq.s32.totalorder %s23, 0
      %p176 = por %p174, %p175
      %s177 = ssub.s32 %s17, %s24
      %p178 = scmp.eq.s32.totalorder %s177, 0
      %s180 = sadd.s32 %s179, 1
      %s181 = scalar_select %p178, %s179, %s180
      %p184 = pneg %p178
      %p185 = scmp.eq.s32.totalorder %s17, 7
      %p186 = por %p184, %p185
      %p187 = scmp.ne.s32.totalorder %s179, %s182
      %p188 = scmp.eq.s32.totalorder %s17, 0
      %p189 = por %p187, %p188
      %p190 = scmp.ne.s32.totalorder %s179, %s182
      %p191 = scmp.eq.s32.totalorder %s22, 7
      %p192 = por %p190, %p191
      %p193 = scmp.ne.s32.totalorder %s182, %s183
      %p194 = scmp.eq.s32.totalorder %s22, 0
      %p195 = por %p193, %p194
      %p196 = scmp.ne.s32.totalorder %s182, %s183
      %p197 = scmp.eq.s32.totalorder %s23, 7
      %p198 = por %p196, %p197
      %p200 = scmp.ne.s32.totalorder %s183, %s199
      %p201 = scmp.eq.s32.totalorder %s23, 0
      %p202 = por %p200, %p201
      %s203 = ssub.s32 %s17, %s24
      %p204 = scmp.eq.s32.totalorder %s203, 0
      %s206 = sadd.s32 %s205, 1
      %s207 = scalar_select %p204, %s205, %s206
      %p210 = pneg %p204
      %p211 = scmp.eq.s32.totalorder %s17, 7
      %p212 = por %p210, %p211
      %p213 = scmp.ne.s32.totalorder %s205, %s208
      %p214 = scmp.eq.s32.totalorder %s17, 0
      %p215 = por %p213, %p214
      %p216 = scmp.ne.s32.totalorder %s205, %s208
      %p217 = scmp.eq.s32.totalorder %s22, 7
      %p218 = por %p216, %p217
      %p219 = scmp.ne.s32.totalorder %s208, %s209
      %p220 = scmp.eq.s32.totalorder %s22, 0
      %p221 = por %p219, %p220
      %p222 = scmp.ne.s32.totalorder %s208, %s209
      %p223 = scmp.eq.s32.totalorder %s23, 7
      %p224 = por %p222, %p223
      %p226 = scmp.ne.s32.totalorder %s209, %s225
      %p227 = scmp.eq.s32.totalorder %s23, 0
      %p228 = por %p226, %p227
      %p229 = scmp.le.s32.totalorder 1, %s17
      %p230 = scmp.lt.s32.totalorder %s17, 9
      %p231 = pnand %p229, %p230
      %p232 = pneg %p231
      // Predicated region
      $region9: #{tpu_custom_call.1} parent=5 // pred_check
        _
      $region10: #{tpu_custom_call.1} parent=5 // pred_check_branch
        %234 = sbr.rel (%p231) target = $region12
      $region11: #{tpu_custom_call.1} parent=5 // pred_region
        %s235 = ssub.s32 %s17, 1
        // Predicated region
        $region13: #{tpu_custom_call.1} parent=11 // pred_check
          %p236 = pneg %p64
        $region14: #{tpu_custom_call.1} parent=11 // pred_check_branch
          %238 = sbr.rel (%p236) target = $region16
        $region15: #{tpu_custom_call.1} parent=11 // pred_region
          _
        $region16: #{tpu_custom_call.1} parent=11 // pred_fallthru
          _
        // Predicated region
        $region17: #{tpu_custom_call.1} parent=11 // pred_check
          %p239 = pneg %p85
        $region18: #{tpu_custom_call.1} parent=11 // pred_check_branch
          %241 = sbr.rel (%p239) target = $region20
        $region19: #{tpu_custom_call.1} parent=11 // pred_region
          _
        $region20: #{tpu_custom_call.1} parent=11 // pred_fallthru
          _
        // Predicated region
        $region21: #{tpu_custom_call.1} parent=11 // pred_check
          %p242 = pneg %p106
        $region22: #{tpu_custom_call.1} parent=11 // pred_check_branch
          %244 = sbr.rel (%p242) target = $region24
        $region23: #{tpu_custom_call.1} parent=11 // pred_region
          _
        $region24: #{tpu_custom_call.1} parent=11 // pred_fallthru
          _
        // Predicated region
        $region25: #{tpu_custom_call.1} parent=11 // pred_check
          %p245 = pneg %p127
        $region26: #{tpu_custom_call.1} parent=11 // pred_check_branch
          %247 = sbr.rel (%p245) target = $region28
        $region27: #{tpu_custom_call.1} parent=11 // pred_region
          _
        $region28: #{tpu_custom_call.1} parent=11 // pred_fallthru
          _
        // Predicated region
        $region29: #{tpu_custom_call.1} parent=11 // pred_check
          %p248 = pneg %p148
        $region30: #{tpu_custom_call.1} parent=11 // pred_check_branch
          %250 = sbr.rel (%p248) target = $region32
        $region31: #{tpu_custom_call.1} parent=11 // pred_region
          _
        $region32: #{tpu_custom_call.1} parent=11 // pred_fallthru
          _
        // Predicated region
        $region33: #{tpu_custom_call.1} parent=11 // pred_check
          %p251 = pneg %p169
        $region34: #{tpu_custom_call.1} parent=11 // pred_check_branch
          %253 = sbr.rel (%p251) target = $region36
        $region35: #{tpu_custom_call.1} parent=11 // pred_region
          _
        $region36: #{tpu_custom_call.1} parent=11 // pred_fallthru
          _
      $region12: #{tpu_custom_call.1} parent=5 // pred_fallthru
        _
      %p254 = scmp.lt.s32.totalorder %s17, 8
      // Predicated region
      $region37: #{tpu_custom_call.1} parent=5 // pred_check
        %p255 = pneg %p254
      $region38: #{tpu_custom_call.1} parent=5 // pred_check_branch
        %257 = sbr.rel (%p255) target = $region40
      $region39: #{tpu_custom_call.1} parent=5 // pred_region
        // Predicated region
        $region41: #{tpu_custom_call.1} parent=39 // pred_check
          %p258 = pneg %p37
        $region42: #{tpu_custom_call.1} parent=39 // pred_check_branch
          %260 = sbr.rel (%p258) target = $region44
        $region43: #{tpu_custom_call.1} parent=39 // pred_region
          %s261 = smul.u32 16, %s17
          %s262 = ssub.s32 125, %s261
          %p263 = scmp.lt.s32.totalorder %s262, 16
          %s264 = scalar_select %p263, %s262, 16
          %s265 = smul.u32 128, %s264
          %p266 = scmp.lt.s32.totalorder %s261, 124
          %s267 = scalar_select %p266, %s261, 124
          %s268 = smul.addr %s267, 8
          %s269 = scalar_lea.vmem %s0, %s268
          %s270 = smul.u32 16, %s17
          %s271 = ssub.s32 125, %s270
          %p272 = scmp.lt.s32.totalorder %s271, 16
          %s273 = scalar_select %p272, %s271, 16
          %s274 = smul.u32 128, %s273
        $region44: #{tpu_custom_call.1} parent=39 // pred_fallthru
          _
        // Predicated region
        $region45: #{tpu_custom_call.1} parent=39 // pred_check
          %p275 = pneg %p189
        $region46: #{tpu_custom_call.1} parent=39 // pred_check_branch
          %277 = sbr.rel (%p275) target = $region48
        $region47: #{tpu_custom_call.1} parent=39 // pred_region
          %s278 = smul.u32 16, %s17
          %s279 = ssub.s32 125, %s278
          %p280 = scmp.lt.s32.totalorder %s279, 16
          %s281 = scalar_select %p280, %s279, 16
          %s282 = smul.u32 128, %s281
          %p283 = scmp.lt.s32.totalorder %s278, 124
          %s284 = scalar_select %p283, %s278, 124
          %s285 = smul.addr %s284, 8
          %s286 = scalar_lea.vmem %s7, %s285
          %s287 = smul.u32 16, %s17
          %s288 = ssub.s32 125, %s287
          %p289 = scmp.lt.s32.totalorder %s288, 16
          %s290 = scalar_select %p289, %s288, 16
          %s291 = smul.u32 128, %s290
        $region48: #{tpu_custom_call.1} parent=39 // pred_fallthru
          _
      $region40: #{tpu_custom_call.1} parent=5 // pred_fallthru
        _
      %p292 = scmp.le.s32.totalorder 1, %s17
      %p293 = scmp.lt.s32.totalorder %s17, 9
      %p294 = pnand %p292, %p293
      %p295 = pneg %p294
      // Predicated region
      $region49: #{tpu_custom_call.1} parent=5 // pred_check
        _
      $region50: #{tpu_custom_call.1} parent=5 // pred_check_branch
        %297 = sbr.rel (%p294) target = $region52
      $region51: #{tpu_custom_call.1} parent=5 // pred_region
        %s298 = ssub.s32 %s17, 1
        %s299 = smul.u32 16, %s22
        %s300 = ssub.s32 125, %s299
        %p301 = scmp.lt.s32.totalorder %s300, 16
        %s302 = scalar_select %p301, %s300, 16
        %s303 = smul.u32 128, %s302
        %p304 = scmp.lt.s32.totalorder %s299, 124
        %s305 = scalar_select %p304, %s299, 124
        %s306 = smul.addr %s305, 8
        %s307 = scalar_lea.vmem %s0, %s306
        %p308 = pneg %p43
        %p309 = pneg %p40
        %p310 = pneg %p64
        %p311 = pneg %p61
        %p312 = pneg %p85
        %p313 = pneg %p82
        %p314 = pneg %p106
        %p315 = pneg %p103
        %p316 = pneg %p127
        %p317 = pneg %p124
        %p318 = pneg %p148
        %p319 = pneg %p145
        %p320 = pneg %p169
        %p321 = pneg %p166
        %s322 = smul.u32 16, %s22
        %s323 = ssub.s32 125, %s322
        %p324 = scmp.lt.s32.totalorder %s323, 16
        %s325 = scalar_select %p324, %s323, 16
        %s326 = smul.u32 128, %s325
        %p327 = scmp.lt.s32.totalorder %s322, 124
        %s328 = scalar_select %p327, %s322, 124
        %s329 = smul.addr %s328, 8
        %s330 = scalar_lea.vmem %s7, %s329
        %p331 = pneg %p195
        %p332 = pneg %p192
        %p333 = pneg %p221
        %p334 = pneg %p218
        %s335 = sand.u32 %s208, 1
        %s336 = scalar_lea.sflag [#allocation3], %s335
        %s337 = sand.u32 %s208, 1
        %s338 = smul.addr %s337, 4
        %s339 = scalar_lea.vmem [#allocation2], %s338
        %s340 = smul.u32 16, %s22
        %s341 = ssub.s32 125, %s340
        %p342 = scmp.lt.s32.totalorder %s341, 16
        %s343 = scalar_select %p342, %s341, 16
        %s344 = smul.u32 128, %s343
        %p345 = scmp.lt.s32.totalorder %s340, 124
        %s346 = scalar_select %p345, %s340, 124
        %s347 = smul.addr %s346, 8
        %s348 = scalar_lea.vmem %s0, %s347
        %s349 = smul.u32 16, %s22
        %s350 = ssub.s32 125, %s349
        %p351 = scmp.lt.s32.totalorder %s350, 16
        %s352 = scalar_select %p351, %s350, 16
        %s353 = smul.u32 128, %s352
        %s354 = smul.u32 16, %s22
        %s355 = ssub.s32 125, %s354
        %p356 = scmp.lt.s32.totalorder %s355, 16
        %s357 = scalar_select %p356, %s355, 16
        %s358 = smul.u32 128, %s357
        %p359 = scmp.lt.s32.totalorder %s354, 124
        %s360 = scalar_select %p359, %s354, 124
        %s361 = smul.addr %s360, 8
        %s362 = scalar_lea.vmem %s7, %s361
        %s363 = smul.u32 16, %s22
        %s364 = ssub.s32 125, %s363
        %p365 = scmp.lt.s32.totalorder %s364, 16
        %s366 = scalar_select %p365, %s364, 16
        %s367 = smul.u32 128, %s366
        %v368 = vld [vmem:[%s1] sm:$0xff]
        %v369 = vld [vmem:[%s1 + $0x8] sm:$0xff]
        %v370 = vld [vmem:[%s1 + $0x10] sm:$0xff]
        %v371 = vld [vmem:[%s1 + $0x18] sm:$0xff]
        %v372 = vld [vmem:[%s348] sm:$0xff]
        %v373 = vld [vmem:[%s348 + $0x8] sm:$0xff]
        %v374 = vld [vmem:[%s348 + $0x10] sm:$0xff]
        %v375 = vld [vmem:[%s348 + $0x18] sm:$0xff]
        %v376 = vld [vmem:[%s348 + $0x20] sm:$0xff]
        %v377 = vld [vmem:[%s348 + $0x28] sm:$0xff]
        %v378 = vld [vmem:[%s348 + $0x30] sm:$0xff]
        %v379 = vld [vmem:[%s348 + $0x38] sm:$0xff]
        %v380 = vld [vmem:[%s348 + $0x40] sm:$0xff]
        %v381 = vld [vmem:[%s348 + $0x48] sm:$0xff]
        %v382 = vld [vmem:[%s348 + $0x50] sm:$0xff]
        %v383 = vld [vmem:[%s348 + $0x58] sm:$0xff]
        %v384 = vld [vmem:[%s348 + $0x60] sm:$0xff]
        %v385 = vld [vmem:[%s348 + $0x68] sm:$0xff]
        %v386 = vld [vmem:[%s348 + $0x70] sm:$0xff]
        %v387 = vld [vmem:[%s348 + $0x78] sm:$0xff]
        %v388 = vld [vmem:[%s2] sm:$0xff]
        %v389 = vld [vmem:[%s2 + $0x8] sm:$0xff]
        %v390 = vld [vmem:[%s2 + $0x10] sm:$0xff]
        %v391 = vld [vmem:[%s2 + $0x18] sm:$0xff]
        %393 = vset.pattern.permute.xlu0 0
        %394 = vperm.xlu0 %393, %v388
        %v395 = vpop.permute.xlu0 %394
        %398 = vset.pattern.permute.xlu0 0
        %399 = vperm.xlu0 %398, %v389
        %v400 = vpop.permute.xlu0 %399
        %403 = vset.pattern.permute.xlu0 0
        %404 = vperm.xlu0 %403, %v390
        %v405 = vpop.permute.xlu0 %404
        %408 = vset.pattern.permute.xlu0 0
        %409 = vperm.xlu0 %408, %v391
        %v410 = vpop.permute.xlu0 %409
        %vm412 = vcmask 261120
        %v414 = vsel %vm412, %v368, 0
        %v417 = vsel %vm412, %v369, 0
        %v420 = vsel %vm412, %v370, 0
        %v423 = vsel %vm412, %v371, 0
        %v426 = vsel %vm412, %v372, 0
        %v429 = vsel %vm412, %v373, 0
        %v432 = vsel %vm412, %v374, 0
        %v435 = vsel %vm412, %v375, 0
        %v438 = vsel %vm412, %v376, 0
        %v441 = vsel %vm412, %v377, 0
        %v444 = vsel %vm412, %v378, 0
        %v447 = vsel %vm412, %v379, 0
        %v450 = vsel %vm412, %v380, 0
        %v453 = vsel %vm412, %v381, 0
        %v456 = vsel %vm412, %v382, 0
        %v459 = vsel %vm412, %v383, 0
        %v462 = vsel %vm412, %v384, 0
        %v465 = vsel %vm412, %v385, 0
        %v468 = vsel %vm412, %v386, 0
        %v471 = vsel %vm412, %v387, 0
        %473 = vmatprep.subr.mxu0 0.0
        %474 = vmatpush1.xpose.msra.mxu0 %v426
        %475 = vmatprep.subr.mxu0 0.0
        %476 = vmatpush1.xpose.msra.mxu0 %v429
        %477 = vmatprep.subr.mxu0 0.0
        %478 = vmatpush1.xpose.msra.mxu0 %v432
        %479 = vmatprep.subr.mxu0 0.0
        %480 = vmatpush1.xpose.msra.mxu0 %v435
        %481 = vmatprep.subr.mxu0 0.0
        %482 = vmatpush1.xpose.msra.mxu0 %v438
        %483 = vmatprep.subr.mxu0 0.0
        %484 = vmatpush1.xpose.msra.mxu0 %v441
        %485 = vmatprep.subr.mxu0 0.0
        %486 = vmatpush1.xpose.msra.mxu0 %v444
        %487 = vmatprep.subr.mxu0 0.0
        %488 = vmatpush1.xpose.msra.mxu0 %v447
        %489 = vmatprep.subr.mxu0 0.0
        %490 = vmatpush1.xpose.msra.mxu0 %v450
        %491 = vmatprep.subr.mxu0 0.0
        %492 = vmatpush1.xpose.msra.mxu0 %v453
        %493 = vmatprep.subr.mxu0 0.0
        %494 = vmatpush1.xpose.msra.mxu0 %v456
        %495 = vmatprep.subr.mxu0 0.0
        %496 = vmatpush1.xpose.msra.mxu0 %v459
        %497 = vmatprep.subr.mxu0 0.0
        %498 = vmatpush1.xpose.msra.mxu0 %v462
        %499 = vmatprep.subr.mxu0 0.0
        %500 = vmatpush1.xpose.msra.mxu0 %v465
        %501 = vmatprep.subr.mxu0 0.0
        %502 = vmatpush1.xpose.msra.mxu0 %v468
        %503 = vmatprep.subr.mxu0 0.0
        %504 = vmatpush1.xpose.msra.mxu0 %v471
        %505 = vmatprep.subr.mxu0 0.0
        %506 = vmatpush1.xpose.msra.mxu0 0.0
        %507 = vmatprep.subr.mxu0 0.0
        %508 = vmatpush1.xpose.msra.mxu0 0.0
        %509 = vmatprep.subr.mxu0 0.0
        %510 = vmatpush1.xpose.msra.mxu0 0.0
        %511 = vmatprep.subr.mxu0 0.0
        %512 = vmatpush1.xpose.msra.mxu0 0.0
        %513 = vmatprep.subr.mxu0 0.0
        %514 = vmatpush1.xpose.msra.mxu0 0.0
        %515 = vmatprep.subr.mxu0 0.0
        %516 = vmatpush1.xpose.msra.mxu0 0.0
        %517 = vmatprep.subr.mxu0 0.0
        %518 = vmatpush1.xpose.msra.mxu0 0.0
        %519 = vmatprep.subr.mxu0 0.0
        %520 = vmatpush1.xpose.msra.mxu0 0.0
        %521 = vmatprep.subr.mxu0 0.0
        %522 = vmatpush1.xpose.msra.mxu0 0.0
        %523 = vmatprep.subr.mxu0 0.0
        %524 = vmatpush1.xpose.msra.mxu0 0.0
        %525 = vmatprep.subr.mxu0 0.0
        %526 = vmatpush1.xpose.msra.mxu0 0.0
        %527 = vmatprep.subr.mxu0 0.0
        %528 = vmatpush1.xpose.msra.mxu0 0.0
        %529 = vmatprep.subr.mxu0 0.0
        %530 = vmatpush1.xpose.msra.mxu0 0.0
        %531 = vmatprep.subr.mxu0 0.0
        %532 = vmatpush1.xpose.msra.mxu0 0.0
        %533 = vmatprep.subr.mxu0 0.0
        %534 = vmatpush1.xpose.msra.mxu0 0.0
        %535 = vmatprep.subr.mxu0 0.0
        %536 = vmatpush1.xpose.msra.mxu0 0.0
        %537 = vmatprep.mubr.f32.mxu0 0.0
        %538 = vmatmul.mubr.f32.gmra.mrb[0].mxu0 %v414
        %v539 = vpop.f32.mrb[0].mxu0
        %v540 = vadd.f32 %v395, %v539
        %v541 = vpop.f32.mrb[0].mxu0
        %542 = vmatprep.mubr.f32.mxu0 0.0
        %543 = vmatmul.mubr.f32.gmra.mrb[0].mxu0 %v417
        %v544 = vpop.f32.mrb[0].mxu0
        %v545 = vadd.f32 %v400, %v544
        %v546 = vpop.f32.mrb[0].mxu0
        %547 = vmatprep.mubr.f32.mxu0 0.0
        %548 = vmatmul.mubr.f32.gmra.mrb[0].mxu0 %v420
        %v549 = vpop.f32.mrb[0].mxu0
        %v550 = vadd.f32 %v405, %v549
        %v551 = vpop.f32.mrb[0].mxu0
        %552 = vmatprep.mubr.f32.mxu0 0.0
        %553 = vmatmul.mubr.f32.gmra.mrb[0].mxu0 %v423
        %v554 = vpop.f32.mrb[0].mxu0
        %v555 = vadd.f32 %v410, %v554
        %v556 = vpop.f32.mrb[0].mxu0
        %557 = vdwg.mxu0
        %v558 = vmax.f32 %v540, 0.0
        %v559 = vmax.f32 %v545, 0.0
        %v560 = vmax.f32 %v550, 0.0
        %v561 = vmax.f32 %v555, 0.0
        %v562 = vld [vmem:[%s3] sm:$0xff]
        %v563 = vld [vmem:[%s3 + $0x8] sm:$0xff]
        %v564 = vld [vmem:[%s3 + $0x10] sm:$0xff]
        %v565 = vld [vmem:[%s3 + $0x18] sm:$0xff]
        %v566 = vld [vmem:[%s4] sm:$0xff]
        %v567 = vld [vmem:[%s4 + $0x8] sm:$0xff]
        %v568 = vld [vmem:[%s4 + $0x10] sm:$0xff]
        %v569 = vld [vmem:[%s4 + $0x18] sm:$0xff]
        %571 = vset.pattern.permute.xlu0 0
        %572 = vperm.xlu0 %571, %v566
        %v573 = vpop.permute.xlu0 %572
        %576 = vset.pattern.permute.xlu0 0
        %577 = vperm.xlu0 %576, %v567
        %v578 = vpop.permute.xlu0 %577
        %581 = vset.pattern.permute.xlu0 0
        %582 = vperm.xlu0 %581, %v568
        %v583 = vpop.permute.xlu0 %582
        %586 = vset.pattern.permute.xlu0 0
        %587 = vperm.xlu0 %586, %v569
        %v588 = vpop.permute.xlu0 %587
        %v591 = vsel %vm412, %v562, 0
        %v594 = vsel %vm412, %v563, 0
        %v597 = vsel %vm412, %v564, 0
        %v600 = vsel %vm412, %v565, 0
        %602 = vmatprep.subr.mxu0 0.0
        %603 = vmatpush1.msra.mxu0 %v558
        %604 = vmatprep.subr.mxu0 0.0
        %605 = vmatpush1.msra.mxu0 %v559
        %606 = vmatprep.subr.mxu0 0.0
        %607 = vmatpush1.msra.mxu0 %v560
        %608 = vmatprep.subr.mxu0 0.0
        %609 = vmatpush1.msra.mxu0 %v561
        %610 = vmatprep.subr.mxu0 0.0
        %611 = vmatpush1.msra.mxu0 0.0
        %612 = vmatprep.subr.mxu0 0.0
        %613 = vmatpush1.msra.mxu0 0.0
        %614 = vmatprep.subr.mxu0 0.0
        %615 = vmatpush1.msra.mxu0 0.0
        %616 = vmatprep.subr.mxu0 0.0
        %617 = vmatpush1.msra.mxu0 0.0
        %618 = vmatprep.subr.mxu0 0.0
        %619 = vmatpush1.msra.mxu0 0.0
        %620 = vmatprep.subr.mxu0 0.0
        %621 = vmatpush1.msra.mxu0 0.0
        %622 = vmatprep.subr.mxu0 0.0
        %623 = vmatpush1.msra.mxu0 0.0
        %624 = vmatprep.subr.mxu0 0.0
        %625 = vmatpush1.msra.mxu0 0.0
        %626 = vmatprep.subr.mxu0 0.0
        %627 = vmatpush1.msra.mxu0 0.0
        %628 = vmatprep.subr.mxu0 0.0
        %629 = vmatpush1.msra.mxu0 0.0
        %630 = vmatprep.subr.mxu0 0.0
        %631 = vmatpush1.msra.mxu0 0.0
        %632 = vmatprep.subr.mxu0 0.0
        %633 = vmatpush1.msra.mxu0 0.0
        %634 = vmatprep.subr.mxu0 0.0
        %635 = vmatpush1.msra.mxu0 0.0
        %636 = vmatprep.subr.mxu0 0.0
        %637 = vmatpush1.msra.mxu0 0.0
        %638 = vmatprep.subr.mxu0 0.0
        %639 = vmatpush1.msra.mxu0 0.0
        %640 = vmatprep.subr.mxu0 0.0
        %641 = vmatpush1.msra.mxu0 0.0
        %642 = vmatprep.subr.mxu0 0.0
        %643 = vmatpush1.msra.mxu0 0.0
        %644 = vmatprep.subr.mxu0 0.0
        %645 = vmatpush1.msra.mxu0 0.0
        %646 = vmatprep.subr.mxu0 0.0
        %647 = vmatpush1.msra.mxu0 0.0
        %648 = vmatprep.subr.mxu0 0.0
        %649 = vmatpush1.msra.mxu0 0.0
        %650 = vmatprep.subr.mxu0 0.0
        %651 = vmatpush1.msra.mxu0 0.0
        %652 = vmatprep.subr.mxu0 0.0
        %653 = vmatpush1.msra.mxu0 0.0
        %654 = vmatprep.subr.mxu0 0.0
        %655 = vmatpush1.msra.mxu0 0.0
        %656 = vmatprep.subr.mxu0 0.0
        %657 = vmatpush1.msra.mxu0 0.0
        %658 = vmatprep.subr.mxu0 0.0
        %659 = vmatpush1.msra.mxu0 0.0
        %660 = vmatprep.subr.mxu0 0.0
        %661 = vmatpush1.msra.mxu0 0.0
        %662 = vmatprep.subr.mxu0 0.0
        %663 = vmatpush1.msra.mxu0 0.0
        %664 = vmatprep.subr.mxu0 0.0
        %665 = vmatpush1.msra.mxu0 0.0
        %666 = vmatprep.mubr.f32.mxu0 0.0
        %667 = vmatmul.mubr.f32.gmra.mrb[0].mxu0 %v591
        %v668 = vpop.f32.mrb[0].mxu0
        %v669 = vadd.f32 %v573, %v668
        %v670 = vpop.f32.mrb[0].mxu0
        %671 = vmatprep.mubr.f32.mxu0 0.0
        %672 = vmatmul.mubr.f32.gmra.mrb[0].mxu0 %v594
        %v673 = vpop.f32.mrb[0].mxu0
        %v674 = vadd.f32 %v578, %v673
        %v675 = vpop.f32.mrb[0].mxu0
        %676 = vmatprep.mubr.f32.mxu0 0.0
        %677 = vmatmul.mubr.f32.gmra.mrb[0].mxu0 %v597
        %v678 = vpop.f32.mrb[0].mxu0
        %v679 = vadd.f32 %v583, %v678
        %v680 = vpop.f32.mrb[0].mxu0
        %681 = vmatprep.mubr.f32.mxu0 0.0
        %682 = vmatmul.mubr.f32.gmra.mrb[0].mxu0 %v600
        %v683 = vpop.f32.mrb[0].mxu0
        %v684 = vadd.f32 %v588, %v683
        %v685 = vpop.f32.mrb[0].mxu0
        %686 = vdwg.mxu0
        %v687 = vld [vmem:[%s5] sm:$0xff]
        %v688 = vld [vmem:[%s5 + $0x8] sm:$0xff]
        %v689 = vld [vmem:[%s5 + $0x10] sm:$0xff]
        %v690 = vld [vmem:[%s5 + $0x18] sm:$0xff]
        %v691 = vld [vmem:[%s362] sm:$0xff]
        %v692 = vld [vmem:[%s362 + $0x8] sm:$0xff]
        %v693 = vld [vmem:[%s362 + $0x10] sm:$0xff]
        %v694 = vld [vmem:[%s362 + $0x18] sm:$0xff]
        %v695 = vld [vmem:[%s362 + $0x20] sm:$0xff]
        %v696 = vld [vmem:[%s362 + $0x28] sm:$0xff]
        %v697 = vld [vmem:[%s362 + $0x30] sm:$0xff]
        %v698 = vld [vmem:[%s362 + $0x38] sm:$0xff]
        %v699 = vld [vmem:[%s362 + $0x40] sm:$0xff]
        %v700 = vld [vmem:[%s362 + $0x48] sm:$0xff]
        %v701 = vld [vmem:[%s362 + $0x50] sm:$0xff]
        %v702 = vld [vmem:[%s362 + $0x58] sm:$0xff]
        %v703 = vld [vmem:[%s362 + $0x60] sm:$0xff]
        %v704 = vld [vmem:[%s362 + $0x68] sm:$0xff]
        %v705 = vld [vmem:[%s362 + $0x70] sm:$0xff]
        %v706 = vld [vmem:[%s362 + $0x78] sm:$0xff]
        %v708 = vsel %vm412, %v687, 0
        %v711 = vsel %vm412, %v688, 0
        %v714 = vsel %vm412, %v689, 0
        %v717 = vsel %vm412, %v690, 0
        %v720 = vsel %vm412, %v691, 0
        %v723 = vsel %vm412, %v692, 0
        %v726 = vsel %vm412, %v693, 0
        %v729 = vsel %vm412, %v694, 0
        %v732 = vsel %vm412, %v695, 0
        %v735 = vsel %vm412, %v696, 0
        %v738 = vsel %vm412, %v697, 0
        %v741 = vsel %vm412, %v698, 0
        %v744 = vsel %vm412, %v699, 0
        %v747 = vsel %vm412, %v700, 0
        %v750 = vsel %vm412, %v701, 0
        %v753 = vsel %vm412, %v702, 0
        %v756 = vsel %vm412, %v703, 0
        %v759 = vsel %vm412, %v704, 0
        %v762 = vsel %vm412, %v705, 0
        %v765 = vsel %vm412, %v706, 0
        %767 = vmatprep.subr.mxu0 0.0
        %768 = vmatpush1.xpose.msra.mxu0 %v720
        %769 = vmatprep.subr.mxu0 0.0
        %770 = vmatpush1.xpose.msra.mxu0 %v723
        %771 = vmatprep.subr.mxu0 0.0
        %772 = vmatpush1.xpose.msra.mxu0 %v726
        %773 = vmatprep.subr.mxu0 0.0
        %774 = vmatpush1.xpose.msra.mxu0 %v729
        %775 = vmatprep.subr.mxu0 0.0
        %776 = vmatpush1.xpose.msra.mxu0 %v732
        %777 = vmatprep.subr.mxu0 0.0
        %778 = vmatpush1.xpose.msra.mxu0 %v735
        %779 = vmatprep.subr.mxu0 0.0
        %780 = vmatpush1.xpose.msra.mxu0 %v738
        %781 = vmatprep.subr.mxu0 0.0
        %782 = vmatpush1.xpose.msra.mxu0 %v741
        %783 = vmatprep.subr.mxu0 0.0
        %784 = vmatpush1.xpose.msra.mxu0 %v744
        %785 = vmatprep.subr.mxu0 0.0
        %786 = vmatpush1.xpose.msra.mxu0 %v747
        %787 = vmatprep.subr.mxu0 0.0
        %788 = vmatpush1.xpose.msra.mxu0 %v750
        %789 = vmatprep.subr.mxu0 0.0
        %790 = vmatpush1.xpose.msra.mxu0 %v753
        %791 = vmatprep.subr.mxu0 0.0
        %792 = vmatpush1.xpose.msra.mxu0 %v756
        %793 = vmatprep.subr.mxu0 0.0
        %794 = vmatpush1.xpose.msra.mxu0 %v759
        %795 = vmatprep.subr.mxu0 0.0
        %796 = vmatpush1.xpose.msra.mxu0 %v762
        %797 = vmatprep.subr.mxu0 0.0
        %798 = vmatpush1.xpose.msra.mxu0 %v765
        %799 = vmatprep.subr.mxu0 0.0
        %800 = vmatpush1.xpose.msra.mxu0 0.0
        %801 = vmatprep.subr.mxu0 0.0
        %802 = vmatpush1.xpose.msra.mxu0 0.0
        %803 = vmatprep.subr.mxu0 0.0
        %804 = vmatpush1.xpose.msra.mxu0 0.0
        %805 = vmatprep.subr.mxu0 0.0
        %806 = vmatpush1.xpose.msra.mxu0 0.0
        %807 = vmatprep.subr.mxu0 0.0
        %808 = vmatpush1.xpose.msra.mxu0 0.0
        %809 = vmatprep.subr.mxu0 0.0
        %810 = vmatpush1.xpose.msra.mxu0 0.0
        %811 = vmatprep.subr.mxu0 0.0
        %812 = vmatpush1.xpose.msra.mxu0 0.0
        %813 = vmatprep.subr.mxu0 0.0
        %814 = vmatpush1.xpose.msra.mxu0 0.0
        %815 = vmatprep.subr.mxu0 0.0
        %816 = vmatpush1.xpose.msra.mxu0 0.0
        %817 = vmatprep.subr.mxu0 0.0
        %818 = vmatpush1.xpose.msra.mxu0 0.0
        %819 = vmatprep.subr.mxu0 0.0
        %820 = vmatpush1.xpose.msra.mxu0 0.0
        %821 = vmatprep.subr.mxu0 0.0
        %822 = vmatpush1.xpose.msra.mxu0 0.0
        %823 = vmatprep.subr.mxu0 0.0
        %824 = vmatpush1.xpose.msra.mxu0 0.0
        %825 = vmatprep.subr.mxu0 0.0
        %826 = vmatpush1.xpose.msra.mxu0 0.0
        %827 = vmatprep.subr.mxu0 0.0
        %828 = vmatpush1.xpose.msra.mxu0 0.0
        %829 = vmatprep.subr.mxu0 0.0
        %830 = vmatpush1.xpose.msra.mxu0 0.0
        %831 = vmatprep.mubr.f32.mxu0 0.0
        %832 = vmatmul.mubr.f32.gmra.mrb[0].mxu0 %v708
        %v833 = vpop.f32.mrb[0].mxu0
        %v834 = vadd.f32 0.0, %v833
        %v835 = vpop.f32.mrb[0].mxu0
        %836 = vmatprep.mubr.f32.mxu0 0.0
        %837 = vmatmul.mubr.f32.gmra.mrb[0].mxu0 %v711
        %v838 = vpop.f32.mrb[0].mxu0
        %v839 = vadd.f32 0.0, %v838
        %v840 = vpop.f32.mrb[0].mxu0
        %841 = vmatprep.mubr.f32.mxu0 0.0
        %842 = vmatmul.mubr.f32.gmra.mrb[0].mxu0 %v714
        %v843 = vpop.f32.mrb[0].mxu0
        %v844 = vadd.f32 0.0, %v843
        %v845 = vpop.f32.mrb[0].mxu0
        %846 = vmatprep.mubr.f32.mxu0 0.0
        %847 = vmatmul.mubr.f32.gmra.mrb[0].mxu0 %v717
        %v848 = vpop.f32.mrb[0].mxu0
        %v849 = vadd.f32 0.0, %v848
        %v850 = vpop.f32.mrb[0].mxu0
        %851 = vdwg.mxu0
        %v852 = vmul.f32 %v669, %v834
        %v853 = vmul.f32 %v674, %v839
        %v854 = vmul.f32 %v679, %v844
        %v855 = vmul.f32 %v684, %v849
        %v856 = vld [vmem:[%s6] sm:$0xf]
        %v858 = vsel %vm412, %v856, 0
        %860 = vmatprep.subr.mxu0 0.0
        %861 = vmatpush1.msra.mxu0 %v852
        %862 = vmatprep.subr.mxu0 0.0
        %863 = vmatpush1.msra.mxu0 %v853
        %864 = vmatprep.subr.mxu0 0.0
        %865 = vmatpush1.msra.mxu0 %v854
        %866 = vmatprep.subr.mxu0 0.0
        %867 = vmatpush1.msra.mxu0 %v855
        %868 = vmatprep.subr.mxu0 0.0
        %869 = vmatpush1.msra.mxu0 0.0
        %870 = vmatprep.subr.mxu0 0.0
        %871 = vmatpush1.msra.mxu0 0.0
        %872 = vmatprep.subr.mxu0 0.0
        %873 = vmatpush1.msra.mxu0 0.0
        %874 = vmatprep.subr.mxu0 0.0
        %875 = vmatpush1.msra.mxu0 0.0
        %876 = vmatprep.subr.mxu0 0.0
        %877 = vmatpush1.msra.mxu0 0.0
        %878 = vmatprep.subr.mxu0 0.0
        %879 = vmatpush1.msra.mxu0 0.0
        %880 = vmatprep.subr.mxu0 0.0
        %881 = vmatpush1.msra.mxu0 0.0
        %882 = vmatprep.subr.mxu0 0.0
        %883 = vmatpush1.msra.mxu0 0.0
        %884 = vmatprep.subr.mxu0 0.0
        %885 = vmatpush1.msra.mxu0 0.0
        %886 = vmatprep.subr.mxu0 0.0
        %887 = vmatpush1.msra.mxu0 0.0
        %888 = vmatprep.subr.mxu0 0.0
        %889 = vmatpush1.msra.mxu0 0.0
        %890 = vmatprep.subr.mxu0 0.0
        %891 = vmatpush1.msra.mxu0 0.0
        %892 = vmatprep.subr.mxu0 0.0
        %893 = vmatpush1.msra.mxu0 0.0
        %894 = vmatprep.subr.mxu0 0.0
        %895 = vmatpush1.msra.mxu0 0.0
        %896 = vmatprep.subr.mxu0 0.0
        %897 = vmatpush1.msra.mxu0 0.0
        %898 = vmatprep.subr.mxu0 0.0
        %899 = vmatpush1.msra.mxu0 0.0
        %900 = vmatprep.subr.mxu0 0.0
        %901 = vmatpush1.msra.mxu0 0.0
        %902 = vmatprep.subr.mxu0 0.0
        %903 = vmatpush1.msra.mxu0 0.0
        %904 = vmatprep.subr.mxu0 0.0
        %905 = vmatpush1.msra.mxu0 0.0
        %906 = vmatprep.subr.mxu0 0.0
        %907 = vmatpush1.msra.mxu0 0.0
        %908 = vmatprep.subr.mxu0 0.0
        %909 = vmatpush1.msra.mxu0 0.0
        %910 = vmatprep.subr.mxu0 0.0
        %911 = vmatpush1.msra.mxu0 0.0
        %912 = vmatprep.subr.mxu0 0.0
        %913 = vmatpush1.msra.mxu0 0.0
        %914 = vmatprep.subr.mxu0 0.0
        %915 = vmatpush1.msra.mxu0 0.0
        %916 = vmatprep.subr.mxu0 0.0
        %917 = vmatpush1.msra.mxu0 0.0
        %918 = vmatprep.subr.mxu0 0.0
        %919 = vmatpush1.msra.mxu0 0.0
        %920 = vmatprep.subr.mxu0 0.0
        %921 = vmatpush1.msra.mxu0 0.0
        %922 = vmatprep.subr.mxu0 0.0
        %923 = vmatpush1.msra.mxu0 0.0
        %924 = vmatprep.mubr.f32.mxu0 0.0
        %925 = vmatmul.mubr.f32.gmra.mrb[0].mxu0 %v858
        %v926 = vpop.f32.mrb[0].mxu0
        %v927 = vadd.f32 0.0, %v926
        %v928 = vpop.f32.mrb[0].mxu0
        %929 = vdwg.mxu0
        %930 = vst [vmem:[%s339] sm:$0xf] %v927
        %s931 = sand.u32 %s208, 1
        %s932 = scalar_lea.sflag [#allocation3], %s931
        %s933 = sand.u32 %s208, 1
        %s934 = smul.addr %s933, 4
        %s935 = scalar_lea.vmem [#allocation2], %s934
        // Predicated region
        $region53: #{tpu_custom_call.1} parent=51 // pred_check
          %p936 = pneg %p218
        $region54: #{tpu_custom_call.1} parent=51 // pred_check_branch
          %938 = sbr.rel (%p936) target = $region56
        $region55: #{tpu_custom_call.1} parent=51 // pred_region
          %s940 = ssub.s32 64, 64
          %941 = vsyncadd %s932, %s940
          %s942 = smul.addr %s22, 64
          %s943 = scalar_lea.hbm %s8, %s942
          %s945 = sshll.u32 %s935, 4
          %s946 = int_to_ptr.vmem [resolvable:$true] %s945
          %948 = dma.vmem_to_hbm [thread:$0]  %s946, 64, %s943, %s932
        $region56: #{tpu_custom_call.1} parent=51 // pred_fallthru
          _
      $region52: #{tpu_custom_call.1} parent=5 // pred_fallthru
        _
      %p949 = scmp.le.s32.totalorder 2, %s17
      // Predicated region
      $region57: #{tpu_custom_call.1} parent=5 // pred_check
        %p950 = pneg %p949
      $region58: #{tpu_custom_call.1} parent=5 // pred_check_branch
        %952 = sbr.rel (%p950) target = $region60
      $region59: #{tpu_custom_call.1} parent=5 // pred_region
        %s953 = ssub.s32 %s17, 2
        // Predicated region
        $region61: #{tpu_custom_call.1} parent=59 // pred_check
          %p954 = pneg %p224
        $region62: #{tpu_custom_call.1} parent=59 // pred_check_branch
          %956 = sbr.rel (%p954) target = $region64
        $region63: #{tpu_custom_call.1} parent=59 // pred_region
          %s957 = sand.u32 %s209, 1
          %s958 = scalar_lea.sflag [#allocation3], %s957
          %s959 = sand.u32 %s209, 1
          %s960 = smul.addr %s959, 4
          %s961 = scalar_lea.vmem [#allocation2], %s960
          %962 = dma.done %s958, 64
        $region64: #{tpu_custom_call.1} parent=59 // pred_fallthru
          _
      $region60: #{tpu_custom_call.1} parent=5 // pred_fallthru
        _
    $region6: #{tpu_custom_call.1} parent=1 // loop_footer
      %s21 = sadd.s32 1, %s17
    $region7: #{tpu_custom_call.1} parent=1 // loop_footer_branch
      %16 = sbr.rel target = $region3
    $region8: #{tpu_custom_call.1} parent=1 // loop_exit
      _
    %963 = vsyncpa [#allocation3], 1
    %s964 = scalar_lea.sflag [#allocation3], 1
    %965 = vsyncpa %s964, 1

</llo_original>
